<compile_context>
chip_gen: v5e
topology: v5e:2x2
jax: 0.10.0
libtpu: 0.0.40
codegen_flags: <defaults>
</compile_context>

<pallas_src>
import functools

import jax
import jax.numpy as jnp
from jax.experimental import pallas as pl
from jax.experimental.pallas import tpu as pltpu


def _round_up(x, m):
    return (x + m - 1) // m * m


def _device_kind():
    try:
        return jax.devices()[0].device_kind.lower()
    except Exception:
        return ""


def _mdd_kernel(*refs, margin, b_valid, tiles_per_core, has_ws, has_wt):
    has_w = has_ws or has_wt
    y_s_ref, y_s_adv_ref, y_t_ref, y_t_adv_ref = refs[:4]
    if has_w:
        w_ref = refs[4]
        out_ref, acc_ref = refs[5], refs[6]
    else:
        out_ref, acc_ref = refs[4], refs[5]

    c_id = pl.program_id(0)            # core / parallel chunk
    t_id = pl.program_id(1)            # batch-tile within the chunk (reduction)

    @pl.when(t_id == 0)
    def _():
        acc_ref[...] = jnp.zeros_like(acc_ref)

    y_s = y_s_ref[...].astype(jnp.float32)
    y_s_adv = y_s_adv_ref[...].astype(jnp.float32)
    y_t = y_t_ref[...].astype(jnp.float32)
    y_t_adv = y_t_adv_ref[...].astype(jnp.float32)

    TB, C = y_s.shape
    col = jax.lax.broadcasted_iota(jnp.int32, (TB, C), 1)

    def argmax_idx(y):
        # first-occurrence argmax along the class axis, kept as (TB, 1)
        mx = jnp.max(y, axis=-1, keepdims=True)
        idx = jnp.where(y == mx, col, C)
        return jnp.min(idx, axis=-1, keepdims=True)

    def select(vals, lbl):
        # vals[b, lbl[b]] via one-hot masked sum → (TB, 1)
        onehot = (col == lbl).astype(jnp.float32)
        return jnp.sum(onehot * vals, axis=-1, keepdims=True)

    # ---- source disparity: per-sample cross-entropy(y_s_adv, argmax(y_s)) ----
    lbl_s = argmax_idx(y_s)
    m_s = jnp.max(y_s_adv, axis=-1, keepdims=True)
    lse_s = m_s + jnp.log(jnp.sum(jnp.exp(y_s_adv - m_s), axis=-1, keepdims=True))
    ce_s = lse_s - select(y_s_adv, lbl_s)            # (TB, 1)

    # ---- target disparity: shift_log(1 - softmax(y_t_adv))[argmax(y_t)] ----
    # softmax never materialized: select the numerator, scale by 1/denominator.
    lbl_t = argmax_idx(y_t)
    m_t = jnp.max(y_t_adv, axis=-1, keepdims=True)
    e_t = jnp.exp(y_t_adv - m_t)
    denom = jnp.sum(e_t, axis=-1, keepdims=True)     # (TB, 1)
    p_lbl = select(e_t, lbl_t) * pl.reciprocal(denom, approx=False)
    tgt_disp = jnp.log(jnp.minimum(1.0 - p_lbl + 1e-6, 1.0))

    # ---- MDD forward ----
    src = (-margin) * ce_s
    tgt = tgt_disp
    if has_ws and has_wt:
        w = w_ref[...].astype(jnp.float32)           # (TB, 2) packed weights
        src = src * w[:, 0:1]
        tgt = tgt * w[:, 1:2]
    elif has_ws:
        src = src * w_ref[...].astype(jnp.float32)
    elif has_wt:
        tgt = tgt * w_ref[...].astype(jnp.float32)
    per_sample = src + tgt                           # (TB, 1)

    # Mask padded-tail / duplicated (clamped index_map) rows AFTER all compute
    # so garbage from out-of-bounds block regions never reaches the reduction.
    row = jax.lax.broadcasted_iota(jnp.int32, (TB, 1), 0)
    global_row = (c_id * tiles_per_core + t_id) * TB + row
    per_sample = jnp.where(global_row < b_valid, per_sample, 0.0)

    # Wide accumulator: plain VPU add per step; single XLU reduce in epilogue.
    acc_ref[...] += per_sample

    @pl.when(t_id == pl.num_programs(1) - 1)
    def _():
        s = jnp.sum(acc_ref[...]).reshape(1, 1)
        out_ref[...] = jnp.broadcast_to(s, (8, 128))  # lane/sublane-dense store


def margin_disparity_discrepancy(y_s, y_s_adv, y_t, y_t_adv,
                                 w_s=None, w_t=None,
                                 margin: float = 4.0,
                                 reduction: str = "mean",
                                 _max_tile_rows=None):
    B, C = y_s.shape
    has_ws = w_s is not None
    has_wt = w_t is not None

    # -------- generation-aware core split & VMEM budget --------
    kind = _device_kind()
    is_v7 = any(tag in kind for tag in ("v7", "tpu7", "7x"))
    ncore = 2 if is_v7 else 1                  # 2 TensorCores/chip only on v7x
    if is_v7:
        vmem_limit = 48 * 1024 * 1024          # v7x: 64 MiB physical per TC
        budget = 36 * 1024 * 1024
    else:
        vmem_limit = 64 * 1024 * 1024          # v5e/v6e: 128 MiB physical
        budget = 44 * 1024 * 1024

    itemsize = jnp.dtype(y_s.dtype).itemsize
    sub = {4: 8, 2: 16, 1: 32}.get(itemsize, 8)    # sublane minimum per dtype
    c_pad = _round_up(C, 128)                      # lane padding in VMEM

    # VMEM bytes per tile row:
    #   4 logit inputs x 2 pipeline buffers (input dtype), lane-padded
    # + ~8 f32 (TB, c_pad) in-kernel temporaries (upcasts, iota, one-hot, exp)
    # + (TB, 1)->128-lane f32 accumulator
    # + weight stream (2 buffers, <=2 f32 cols lane-padded) when present
    per_row = 4 * 2 * c_pad * itemsize + 8 * 4 * c_pad + 128 * 4
    if has_ws or has_wt:
        per_row += 2 * 128 * 4

    tb = budget // max(per_row, 1)
    if _max_tile_rows is not None:
        tb = min(tb, int(_max_tile_rows))
    tb = max(sub, (tb // sub) * sub)
    tb = min(tb, _round_up(B, sub))

    n_tiles = (B + tb - 1) // tb
    tiles_per_core = (n_tiles + ncore - 1) // ncore

    def logit_map(c, t):
        # Clamp so out-of-range (core, tile) pairs re-read the last valid tile
        # instead of requiring wrapper-side padding; those rows are masked
        # in-kernel via `global_row < b_valid`.
        return (jnp.minimum(c * tiles_per_core + t, n_tiles - 1), 0)

    in_specs = [pl.BlockSpec((tb, C), logit_map)] * 4
    args = [y_s, y_s_adv, y_t, y_t_adv]

    if has_ws and has_wt:
        w = jnp.stack([jnp.asarray(w_s, jnp.float32),
                       jnp.asarray(w_t, jnp.float32)], axis=1)     # (B, 2)
        args.append(w)
        in_specs.append(pl.BlockSpec((tb, 2), logit_map))
    elif has_ws or has_wt:
        w = jnp.asarray(w_s if has_ws else w_t, jnp.float32).reshape(B, 1)
        args.append(w)
        in_specs.append(pl.BlockSpec((tb, 1), logit_map))

    kernel = functools.partial(
        _mdd_kernel, margin=float(margin), b_valid=B,
        tiles_per_core=tiles_per_core, has_ws=has_ws, has_wt=has_wt)

    if ncore > 1:
        # Shard the leading batch-chunk axis across v7x's two TensorCores.
        dim_sem = (pltpu.CORE_PARALLEL, pltpu.ARBITRARY)
    else:
        dim_sem = (pltpu.PARALLEL, pltpu.ARBITRARY)

    partials = pl.pallas_call(
        kernel,
        out_shape=jax.ShapeDtypeStruct((ncore, 8, 128), jnp.float32),
        grid_spec=pltpu.PrefetchScalarGridSpec(
            num_scalar_prefetch=0,
            grid=(ncore, tiles_per_core),
            in_specs=in_specs,
            out_specs=pl.BlockSpec((None, 8, 128), lambda c, t: (c, 0, 0)),
            scratch_shapes=[pltpu.VMEM((tb, 1), jnp.float32)],
        ),
        compiler_params=pltpu.CompilerParams(
            dimension_semantics=dim_sem,
            vmem_limit_bytes=vmem_limit,
        ),
    )(*args)

    total = jnp.sum(partials[:, 0, 0])
    if reduction == "mean":
        return total / jnp.float32(B)
    elif reduction == "sum":
        return total
    else:
        # TODO(synk): reduction='none' (per-sample output) not implemented.
        raise NotImplementedError("reduction='none' is not supported")


def _reference(y_s, y_s_adv, y_t, y_t_adv, w_s=None, w_t=None, margin=4.0):
    # pure-JAX reference of the same math (for self-check)
    lbl_s = jnp.argmax(y_s, axis=1)
    log_p_s = jax.nn.log_softmax(y_s_adv, axis=1)
    ce_s = -jnp.take_along_axis(log_p_s, lbl_s[:, None], axis=1)[:, 0]
    lbl_t = jnp.argmax(y_t, axis=1)
    p_t = jax.nn.softmax(y_t_adv, axis=1)
    p_lbl = jnp.take_along_axis(p_t, lbl_t[:, None], axis=1)[:, 0]
    tgt = jnp.log(jnp.minimum(1.0 - p_lbl + 1e-6, 1.0))
    src = -margin * ce_s
    if w_s is not None:
        src = src * w_s
    if w_t is not None:
        tgt = tgt * w_t
    return jnp.mean(src + tgt)


if __name__ == "__main__":
    # --- check 1: small batch, no weights (specialized kernel path) ---
    k1, k2, k3, k4 = jax.random.split(jax.random.PRNGKey(0), 4)
    B, C = 8, 32
    y_s = jax.random.normal(k1, (B, C), jnp.float32)
    y_s_adv = jax.random.normal(k2, (B, C), jnp.float32)
    y_t = jax.random.normal(k3, (B, C), jnp.float32)
    y_t_adv = jax.random.normal(k4, (B, C), jnp.float32)

    loss = margin_disparity_discrepancy(y_s, y_s_adv, y_t, y_t_adv, margin=4.0)
    jax.block_until_ready(loss)
    ref = _reference(y_s, y_s_adv, y_t, y_t_adv, margin=4.0)
    assert jnp.allclose(loss, ref, rtol=1e-5, atol=1e-5), (loss, ref)

    # --- check 2: B not a multiple of 8, both weights packed, partial block ---
    k5, k6, k7, k8, k9, k10 = jax.random.split(jax.random.PRNGKey(1), 6)
    B2, C2 = 13, 32
    y_s2 = jax.random.normal(k5, (B2, C2), jnp.float32)
    y_s_adv2 = jax.random.normal(k6, (B2, C2), jnp.float32)
    y_t2 = jax.random.normal(k7, (B2, C2), jnp.float32)
    y_t_adv2 = jax.random.normal(k8, (B2, C2), jnp.float32)
    w_s2 = jax.random.uniform(k9, (B2,), jnp.float32)
    w_t2 = jax.random.uniform(k10, (B2,), jnp.float32)

    loss2 = margin_disparity_discrepancy(y_s2, y_s_adv2, y_t2, y_t_adv2,
                                         w_s=w_s2, w_t=w_t2, margin=4.0)
    jax.block_until_ready(loss2)
    ref2 = _reference(y_s2, y_s_adv2, y_t2, y_t_adv2, w_s=w_s2, w_t=w_t2,
                      margin=4.0)
    assert jnp.allclose(loss2, ref2, rtol=1e-5, atol=1e-5), (loss2, ref2)

    # --- check 3: multi-tile accumulation + single-weight path + masked tail ---
    k11, k12, k13, k14, k15 = jax.random.split(jax.random.PRNGKey(2), 5)
    B3, C3 = 40, 32
    y_s3 = jax.random.normal(k11, (B3, C3), jnp.float32)
    y_s_adv3 = jax.random.normal(k12, (B3, C3), jnp.float32)
    y_t3 = jax.random.normal(k13, (B3, C3), jnp.float32)
    y_t_adv3 = jax.random.normal(k14, (B3, C3), jnp.float32)
    w_s3 = jax.random.uniform(k15, (B3,), jnp.float32)

    loss3 = margin_disparity_discrepancy(y_s3, y_s_adv3, y_t3, y_t_adv3,
                                         w_s=w_s3, margin=2.0,
                                         _max_tile_rows=16)
    jax.block_until_ready(loss3)
    ref3 = _reference(y_s3, y_s_adv3, y_t3, y_t_adv3, w_s=w_s3, margin=2.0)
    assert jnp.allclose(loss3, ref3, rtol=1e-5, atol=1e-5), (loss3, ref3)

    print("KERNEL_OK")
</pallas_src>

<mosaic_0001>
module attributes {stable_mosaic.version = 11 : i64} {
  func.func @_mdd_kernel(%arg0: i32, %arg1: i32, %arg2: memref<8x32xf32, #tpu.memory_space<vmem>>, %arg3: memref<8x32xf32, #tpu.memory_space<vmem>>, %arg4: memref<8x32xf32, #tpu.memory_space<vmem>>, %arg5: memref<8x32xf32, #tpu.memory_space<vmem>>, %arg6: memref<1x8x128xf32, #tpu.memory_space<vmem>>, %arg7: memref<8x1xf32, #tpu.memory_space<vmem>>) attributes {dimension_semantics = [#tpu.dimension_semantics<parallel>, #tpu.dimension_semantics<arbitrary>], iteration_bounds = array<i64: 1, 1>, scalar_prefetch = 0 : i64, scratch_operands = 1 : i64, tpu.core_type = #tpu.core_type<tc>, window_params = [{transform_indices = @transform_0, window_bounds = array<i64: 8, 32>}, {transform_indices = @transform_1, window_bounds = array<i64: 8, 32>}, {transform_indices = @transform_2, window_bounds = array<i64: 8, 32>}, {transform_indices = @transform_3, window_bounds = array<i64: 8, 32>}, {transform_indices = @transform_4, window_bounds = array<i64: 1, 8, 128>}]} {
    %c0_i32 = arith.constant 0 : i32
    %0 = arith.cmpi eq, %arg1, %c0_i32 : i32
    %1 = arith.extui %0 : i1 to i32
    %c0_i32_0 = arith.constant 0 : i32
    %2 = arith.cmpi ne, %1, %c0_i32_0 : i32
    scf.if %2 {
      %cst_30 = arith.constant 0.000000e+00 : f32
      %83 = vector.broadcast %cst_30 : f32 to vector<8x1xf32>
      %c0_31 = arith.constant 0 : index
      %c0_32 = arith.constant 0 : index
      %84 = vector.load %arg7[%c0_31, %c0_32] : memref<8x1xf32, #tpu.memory_space<vmem>>, vector<8x1xf32>
      tpu.vector_store %arg7[%c0_31, %c0_32], %83 {strides = array<i32>} : memref<8x1xf32, #tpu.memory_space<vmem>>, vector<8x1xf32>,
    } else {
    }
    %c0 = arith.constant 0 : index
    %c0_1 = arith.constant 0 : index
    %3 = vector.load %arg2[%c0, %c0_1] : memref<8x32xf32, #tpu.memory_space<vmem>>, vector<8x32xf32>
    %c0_2 = arith.constant 0 : index
    %c0_3 = arith.constant 0 : index
    %4 = vector.load %arg3[%c0_2, %c0_3] : memref<8x32xf32, #tpu.memory_space<vmem>>, vector<8x32xf32>
    %c0_4 = arith.constant 0 : index
    %c0_5 = arith.constant 0 : index
    %5 = vector.load %arg4[%c0_4, %c0_5] : memref<8x32xf32, #tpu.memory_space<vmem>>, vector<8x32xf32>
    %c0_6 = arith.constant 0 : index
    %c0_7 = arith.constant 0 : index
    %6 = vector.load %arg5[%c0_6, %c0_7] : memref<8x32xf32, #tpu.memory_space<vmem>>, vector<8x32xf32>
    %7 = tpu.iota {dimensions = array<i32: 1>} : vector<8x32xi32>
    %cst = arith.constant dense<0xFF800000> : vector<8xf32>
    %8 = vector.multi_reduction <maximumf>, %3, %cst [1] : vector<8x32xf32> to vector<8xf32>
    %9 = vector.shape_cast %8 : vector<8xf32> to vector<8x1xf32>
    %10 = vector.broadcast %9 : vector<8x1xf32> to vector<8x32xf32>
    %11 = arith.cmpf oeq, %3, %10 : vector<8x32xf32>
    %c32_i32 = arith.constant 32 : i32
    %12 = vector.broadcast %c32_i32 : i32 to vector<8x32xi32>
    %13 = arith.select %11, %7, %12 : vector<8x32xi1>, vector<8x32xi32>
    %cst_8 = arith.constant dense<2147483647> : vector<8xi32>
    %14 = vector.multi_reduction <minsi>, %13, %cst_8 [1] : vector<8x32xi32> to vector<8xi32>
    %15 = vector.shape_cast %14 : vector<8xi32> to vector<8x1xi32>
    %cst_9 = arith.constant dense<0xFF800000> : vector<8xf32>
    %16 = vector.multi_reduction <maximumf>, %4, %cst_9 [1] : vector<8x32xf32> to vector<8xf32>
    %17 = vector.shape_cast %16 : vector<8xf32> to vector<8x1xf32>
    %18 = vector.broadcast %17 : vector<8x1xf32> to vector<8x32xf32>
    %19 = arith.subf %4, %18 : vector<8x32xf32>
    %20 = math.exp %19 : vector<8x32xf32>
    %cst_10 = arith.constant dense<0.000000e+00> : vector<8xf32>
    %21 = vector.multi_reduction <add>, %20, %cst_10 [1] : vector<8x32xf32> to vector<8xf32>
    %22 = vector.shape_cast %21 : vector<8xf32> to vector<8x1xf32>
    %23 = math.log %22 : vector<8x1xf32>
    %24 = arith.addf %17, %23 : vector<8x1xf32>
    %25 = vector.broadcast %15 : vector<8x1xi32> to vector<8x32xi32>
    %26 = arith.cmpi eq, %7, %25 : vector<8x32xi32>
    %27 = arith.extui %26 : vector<8x32xi1> to vector<8x32xi32>
    %28 = arith.sitofp %27 : vector<8x32xi32> to vector<8x32xf32>
    %29 = arith.mulf %28, %4 : vector<8x32xf32>
    %cst_11 = arith.constant dense<0.000000e+00> : vector<8xf32>
    %30 = vector.multi_reduction <add>, %29, %cst_11 [1] : vector<8x32xf32> to vector<8xf32>
    %31 = vector.shape_cast %30 : vector<8xf32> to vector<8x1xf32>
    %32 = arith.subf %24, %31 : vector<8x1xf32>
    %cst_12 = arith.constant dense<0xFF800000> : vector<8xf32>
    %33 = vector.multi_reduction <maximumf>, %5, %cst_12 [1] : vector<8x32xf32> to vector<8xf32>
    %34 = vector.shape_cast %33 : vector<8xf32> to vector<8x1xf32>
    %35 = vector.broadcast %34 : vector<8x1xf32> to vector<8x32xf32>
    %36 = arith.cmpf oeq, %5, %35 : vector<8x32xf32>
    %c32_i32_13 = arith.constant 32 : i32
    %37 = vector.broadcast %c32_i32_13 : i32 to vector<8x32xi32>
    %38 = arith.select %36, %7, %37 : vector<8x32xi1>, vector<8x32xi32>
    %cst_14 = arith.constant dense<2147483647> : vector<8xi32>
    %39 = vector.multi_reduction <minsi>, %38, %cst_14 [1] : vector<8x32xi32> to vector<8xi32>
    %40 = vector.shape_cast %39 : vector<8xi32> to vector<8x1xi32>
    %cst_15 = arith.constant dense<0xFF800000> : vector<8xf32>
    %41 = vector.multi_reduction <maximumf>, %6, %cst_15 [1] : vector<8x32xf32> to vector<8xf32>
    %42 = vector.shape_cast %41 : vector<8xf32> to vector<8x1xf32>
    %43 = vector.broadcast %42 : vector<8x1xf32> to vector<8x32xf32>
    %44 = arith.subf %6, %43 : vector<8x32xf32>
    %45 = math.exp %44 : vector<8x32xf32>
    %cst_16 = arith.constant dense<0.000000e+00> : vector<8xf32>
    %46 = vector.multi_reduction <add>, %45, %cst_16 [1] : vector<8x32xf32> to vector<8xf32>
    %47 = vector.shape_cast %46 : vector<8xf32> to vector<8x1xf32>
    %48 = vector.broadcast %40 : vector<8x1xi32> to vector<8x32xi32>
    %49 = arith.cmpi eq, %7, %48 : vector<8x32xi32>
    %50 = arith.extui %49 : vector<8x32xi1> to vector<8x32xi32>
    %51 = arith.sitofp %50 : vector<8x32xi32> to vector<8x32xf32>
    %52 = arith.mulf %51, %45 : vector<8x32xf32>
    %cst_17 = arith.constant dense<0.000000e+00> : vector<8xf32>
    %53 = vector.multi_reduction <add>, %52, %cst_17 [1] : vector<8x32xf32> to vector<8xf32>
    %54 = vector.shape_cast %53 : vector<8xf32> to vector<8x1xf32>
    %55 = tpu.reciprocal %47 : vector<8x1xf32> -> vector<8x1xf32>
    %56 = arith.mulf %54, %55 : vector<8x1xf32>
    %cst_18 = arith.constant 1.000000e+00 : f32
    %57 = vector.broadcast %cst_18 : f32 to vector<8x1xf32>
    %58 = arith.subf %57, %56 : vector<8x1xf32>
    %cst_19 = arith.constant 9.99999997E-7 : f32
    %59 = vector.broadcast %cst_19 : f32 to vector<8x1xf32>
    %60 = arith.addf %58, %59 : vector<8x1xf32>
    %cst_20 = arith.constant 1.000000e+00 : f32
    %61 = vector.broadcast %cst_20 : f32 to vector<8x1xf32>
    %62 = arith.minimumf %60, %61 : vector<8x1xf32>
    %63 = math.log %62 : vector<8x1xf32>
    %cst_21 = arith.constant -4.000000e+00 : f32
    %64 = vector.broadcast %cst_21 : f32 to vector<8x1xf32>
    %65 = arith.mulf %64, %32 : vector<8x1xf32>
    %66 = arith.addf %65, %63 : vector<8x1xf32>
    %67 = tpu.iota {dimensions = array<i32: 0>} : vector<8x1xi32>
    %c1_i32 = arith.constant 1 : i32
    %68 = arith.muli %arg0, %c1_i32 : i32
    %69 = arith.addi %68, %arg1 : i32
    %c8_i32 = arith.constant 8 : i32
    %70 = arith.muli %69, %c8_i32 : i32
    %71 = vector.broadcast %70 : i32 to vector<8x1xi32>
    %72 = arith.addi %71, %67 : vector<8x1xi32>
    %c8_i32_22 = arith.constant 8 : i32
    %73 = vector.broadcast %c8_i32_22 : i32 to vector<8x1xi32>
    %74 = arith.cmpi slt, %72, %73 : vector<8x1xi32>
    %cst_23 = arith.constant 0.000000e+00 : f32
    %75 = vector.broadcast %cst_23 : f32 to vector<8x1xf32>
    %76 = arith.select %74, %66, %75 : vector<8x1xi1>, vector<8x1xf32>
    %c0_24 = arith.constant 0 : index
    %c0_25 = arith.constant 0 : index
    %77 = vector.load %arg7[%c0_24, %c0_25] : memref<8x1xf32, #tpu.memory_space<vmem>>, vector<8x1xf32>
    %78 = arith.addf %77, %76 : vector<8x1xf32>
    %c0_26 = arith.constant 0 : index
    %c0_27 = arith.constant 0 : index
    %79 = vector.load %arg7[%c0_26, %c0_27] : memref<8x1xf32, #tpu.memory_space<vmem>>, vector<8x1xf32>
    tpu.vector_store %arg7[%c0_26, %c0_27], %78 {strides = array<i32>} : memref<8x1xf32, #tpu.memory_space<vmem>>, vector<8x1xf32>,
    %c0_i32_28 = arith.constant 0 : i32
    %80 = arith.cmpi eq, %arg1, %c0_i32_28 : i32
    %81 = arith.extui %80 : i1 to i32
    %c0_i32_29 = arith.constant 0 : i32
    %82 = arith.cmpi ne, %81, %c0_i32_29 : i32
    scf.if %82 {
      %c0_30 = arith.constant 0 : index
      %c0_31 = arith.constant 0 : index
      %83 = vector.load %arg7[%c0_30, %c0_31] : memref<8x1xf32, #tpu.memory_space<vmem>>, vector<8x1xf32>
      %84 = vector.shape_cast %83 : vector<8x1xf32> to vector<1x8x1xf32>
      %cst_32 = arith.constant dense<0.000000e+00> : vector<1xf32>
      %85 = vector.multi_reduction <add>, %84, %cst_32 [1, 2] : vector<1x8x1xf32> to vector<1xf32>
      %86 = vector.shape_cast %85 : vector<1xf32> to vector<1x1x1xf32>
      %87 = vector.extract %86[0, 0, 0] : f32 from vector<1x1x1xf32>
      %88 = vector.broadcast %87 : f32 to vector<1x1xf32>
      %89 = vector.shape_cast %88 : vector<1x1xf32> to vector<1x1xf32>
      %90 = vector.broadcast %89 : vector<1x1xf32> to vector<8x128xf32>
      %c0_33 = arith.constant 0 : index
      %c0_34 = arith.constant 0 : index
      %c0_35 = arith.constant 0 : index
      %91 = vector.load %arg6[%c0_33, %c0_34, %c0_35] : memref<1x8x128xf32, #tpu.memory_space<vmem>>, vector<1x8x128xf32>
      %92 = vector.shape_cast %91 : vector<1x8x128xf32> to vector<8x128xf32>
      %93 = vector.shape_cast %90 : vector<8x128xf32> to vector<1x8x128xf32>
      tpu.vector_store %arg6[%c0_33, %c0_34, %c0_35], %93 {strides = array<i32>} : memref<1x8x128xf32, #tpu.memory_space<vmem>>, vector<1x8x128xf32>,
    } else {
    }
    return
  }
  func.func @transform_0(%arg0: i32, %arg1: i32) -> (i32, i32) {
    %c1_i32 = arith.constant 1 : i32
    %0 = arith.muli %arg0, %c1_i32 : i32
    %1 = arith.addi %0, %arg1 : i32
    %c0_i32 = arith.constant 0 : i32
    %2 = arith.minsi %1, %c0_i32 : i32
    %c0_i32_0 = arith.constant 0 : i32
    %c0_i32_1 = arith.constant 0 : i32
    return %2, %c0_i32_0 : i32, i32
  }
  func.func @transform_1(%arg0: i32, %arg1: i32) -> (i32, i32) {
    %c1_i32 = arith.constant 1 : i32
    %0 = arith.muli %arg0, %c1_i32 : i32
    %1 = arith.addi %0, %arg1 : i32
    %c0_i32 = arith.constant 0 : i32
    %2 = arith.minsi %1, %c0_i32 : i32
    %c0_i32_0 = arith.constant 0 : i32
    %c0_i32_1 = arith.constant 0 : i32
    return %2, %c0_i32_0 : i32, i32
  }
  func.func @transform_2(%arg0: i32, %arg1: i32) -> (i32, i32) {
    %c1_i32 = arith.constant 1 : i32
    %0 = arith.muli %arg0, %c1_i32 : i32
    %1 = arith.addi %0, %arg1 : i32
    %c0_i32 = arith.constant 0 : i32
    %2 = arith.minsi %1, %c0_i32 : i32
    %c0_i32_0 = arith.constant 0 : i32
    %c0_i32_1 = arith.constant 0 : i32
    return %2, %c0_i32_0 : i32, i32
  }
  func.func @transform_3(%arg0: i32, %arg1: i32) -> (i32, i32) {
    %c1_i32 = arith.constant 1 : i32
    %0 = arith.muli %arg0, %c1_i32 : i32
    %1 = arith.addi %0, %arg1 : i32
    %c0_i32 = arith.constant 0 : i32
    %2 = arith.minsi %1, %c0_i32 : i32
    %c0_i32_0 = arith.constant 0 : i32
    %c0_i32_1 = arith.constant 0 : i32
    return %2, %c0_i32_0 : i32, i32
  }
  func.func @transform_4(%arg0: i32, %arg1: i32) -> (i32, i32, i32) {
    %c0_i32 = arith.constant 0 : i32
    %c0_i32_0 = arith.constant 0 : i32
    %c0_i32_1 = arith.constant 0 : i32
    return %arg0, %c0_i32, %c0_i32_0 : i32, i32, i32
  }
}

</mosaic_0001>

<llo_original>
// kernel: tpu_custom_call.1
$region0: #{tpu_custom_call.1}
  #allocation0 [shape = 'u32[]', space=smem, size = 0x4, offset = 0x4, fixed_abs, tag = 'smem constant byte address 0x4 - core index']
  #allocation1 [shape = 'u32[72,128]{1,0:T(1,128)}', space=vmem, size = 0x9000, scoped, tag = 'internal scratch']
  #allocation2 [shape = 'f32[8,1]{1,0:T(8,128)}', space=vmem, size = 0x1000, scoped, tag = 'scratch operand']
  %s0 = inlined_call_operand.hbm [shape: f32[8,32], index: 0, kind: input, shape index: {}]
  %s1 = inlined_call_operand.hbm [shape: f32[8,32], index: 1, kind: input, shape index: {}]
  %s2 = inlined_call_operand.hbm [shape: f32[8,32], index: 2, kind: input, shape index: {}]
  %s3 = inlined_call_operand.hbm [shape: f32[8,32], index: 3, kind: input, shape index: {}]
  %s4 = inlined_call_operand.hbm [shape: f32[1,8,128], index: 4, kind: output, shape index: {}]
  %s5 = sld [smem:[#allocation0]]
  $region50: #{tpu_custom_call.1} parent=0
    _
  %s7 = ssub.s32 1, %s5
  %s8 = scalar_select 0, %s7, %s5
  $region1: #{tpu_custom_call.1} parent=0
    #allocation3 [shape = 'u8[4096]{0}', space=vmem, size = 0x1000, scoped, tag = 'input window, operand 0, single buffered']
    #allocation4 [shape = 's32[1]{0}', space=sflag, size = 0x4, scoped, tag = 'scoped memory for tpu_custom_call.1']
    #allocation5 [shape = 's32[1]{0}', space=sflag, size = 0x4, scoped, tag = 'scoped memory for tpu_custom_call.1']
    #allocation6 [shape = 'u8[4096]{0}', space=vmem, size = 0x1000, scoped, tag = 'input window, operand 1, single buffered']
    #allocation7 [shape = 's32[1]{0}', space=sflag, size = 0x4, scoped, tag = 'scoped memory for tpu_custom_call.1']
    #allocation8 [shape = 'u8[4096]{0}', space=vmem, size = 0x1000, scoped, tag = 'input window, operand 2, single buffered']
    #allocation9 [shape = 'u8[4096]{0}', space=vmem, size = 0x1000, scoped, tag = 'input window, operand 3, single buffered']
    #allocation10 [shape = 's32[1]{0}', space=sflag, size = 0x4, scoped, tag = 'scoped memory for tpu_custom_call.1']
    #allocation11 [shape = 'u8[4096]{0}', space=vmem, size = 0x1000, scoped, tag = 'output window, operand 0, single buffered']
    %9 = vsyncpa [#allocation4], 0
    %10 = vsyncpa [#allocation7], 0
    %11 = vsyncpa [#allocation10], 0
    %12 = vsyncpa [#allocation5], 0
    // Predicated region
    $region2: #{tpu_custom_call.1} parent=1 // pred_check
      _
    $region3: #{tpu_custom_call.1} parent=1 // pred_check_branch
      %14 = sbr.rel (0) target = $region5
    $region4: #{tpu_custom_call.1} parent=1 // pred_region
      %s15 = sadd.s32 0, 0
      %p16 = scmp.lt.s32.totalorder %s15, 0
      %s17 = scalar_select %p16, %s15, 0
      %19 = vsyncadd [#allocation4], 0
      %s20 = smul.addr %s17, 8
      %s21 = scalar_lea.hbm %s0, %s20
      %s23 = sshll.u32 %s21, 4
      %s24 = int_to_ptr.hbm [resolvable:$true] %s23
      %s25 = sshll.u32 [#allocation3], 4
      %s26 = int_to_ptr.vmem [resolvable:$true] %s25
      %28 = dma.hbm_to_vmem [thread:$0]  %s24, 128, %s26, [#allocation4]
    $region5: #{tpu_custom_call.1} parent=1 // pred_fallthru
      _
    // Predicated region
    $region6: #{tpu_custom_call.1} parent=1 // pred_check
      _
    $region7: #{tpu_custom_call.1} parent=1 // pred_check_branch
      %30 = sbr.rel (0) target = $region9
    $region8: #{tpu_custom_call.1} parent=1 // pred_region
      %s31 = sadd.s32 0, 0
      %p32 = scmp.lt.s32.totalorder %s31, 0
      %s33 = scalar_select %p32, %s31, 0
      %35 = vsyncadd [#allocation7], 0
      %s36 = smul.addr %s33, 8
      %s37 = scalar_lea.hbm %s1, %s36
      %s39 = sshll.u32 %s37, 4
      %s40 = int_to_ptr.hbm [resolvable:$true] %s39
      %s41 = sshll.u32 [#allocation6], 4
      %s42 = int_to_ptr.vmem [resolvable:$true] %s41
      %44 = dma.hbm_to_vmem [thread:$0]  %s40, 128, %s42, [#allocation7]
    $region9: #{tpu_custom_call.1} parent=1 // pred_fallthru
      _
    // Predicated region
    $region10: #{tpu_custom_call.1} parent=1 // pred_check
      _
    $region11: #{tpu_custom_call.1} parent=1 // pred_check_branch
      %46 = sbr.rel (0) target = $region13
    $region12: #{tpu_custom_call.1} parent=1 // pred_region
      %s47 = sadd.s32 0, 0
      %p48 = scmp.lt.s32.totalorder %s47, 0
      %s49 = scalar_select %p48, %s47, 0
      %51 = vsyncadd [#allocation7], 0
      %s52 = smul.addr %s49, 8
      %s53 = scalar_lea.hbm %s2, %s52
      %s55 = sshll.u32 %s53, 4
      %s56 = int_to_ptr.hbm [resolvable:$true] %s55
      %s57 = sshll.u32 [#allocation8], 4
      %s58 = int_to_ptr.vmem [resolvable:$true] %s57
      %60 = dma.hbm_to_vmem [thread:$0]  %s56, 128, %s58, [#allocation7]
    $region13: #{tpu_custom_call.1} parent=1 // pred_fallthru
      _
    // Predicated region
    $region14: #{tpu_custom_call.1} parent=1 // pred_check
      _
    $region15: #{tpu_custom_call.1} parent=1 // pred_check_branch
      %62 = sbr.rel (0) target = $region17
    $region16: #{tpu_custom_call.1} parent=1 // pred_region
      %s63 = sadd.s32 0, 0
      %p64 = scmp.lt.s32.totalorder %s63, 0
      %s65 = scalar_select %p64, %s63, 0
      %67 = vsyncadd [#allocation10], 0
      %s68 = smul.addr %s65, 8
      %s69 = scalar_lea.hbm %s3, %s68
      %s71 = sshll.u32 %s69, 4
      %s72 = int_to_ptr.hbm [resolvable:$true] %s71
      %s73 = sshll.u32 [#allocation9], 4
      %s74 = int_to_ptr.vmem [resolvable:$true] %s73
      %76 = dma.hbm_to_vmem [thread:$0]  %s72, 128, %s74, [#allocation10]
    $region17: #{tpu_custom_call.1} parent=1 // pred_fallthru
      _
    // Predicated region
    $region18: #{tpu_custom_call.1} parent=1 // pred_check
      _
    $region19: #{tpu_custom_call.1} parent=1 // pred_check_branch
      %78 = sbr.rel (0) target = $region21
    $region20: #{tpu_custom_call.1} parent=1 // pred_region
      %80 = dma.done [#allocation4], 128
    $region21: #{tpu_custom_call.1} parent=1 // pred_fallthru
      _
    // Predicated region
    $region22: #{tpu_custom_call.1} parent=1 // pred_check
      _
    $region23: #{tpu_custom_call.1} parent=1 // pred_check_branch
      %82 = sbr.rel (0) target = $region25
    $region24: #{tpu_custom_call.1} parent=1 // pred_region
      %84 = dma.done [#allocation7], 128
    $region25: #{tpu_custom_call.1} parent=1 // pred_fallthru
      _
    // Predicated region
    $region26: #{tpu_custom_call.1} parent=1 // pred_check
      _
    $region27: #{tpu_custom_call.1} parent=1 // pred_check_branch
      %86 = sbr.rel (0) target = $region29
    $region28: #{tpu_custom_call.1} parent=1 // pred_region
      %88 = dma.done [#allocation7], 128
    $region29: #{tpu_custom_call.1} parent=1 // pred_fallthru
      _
    // Predicated region
    $region30: #{tpu_custom_call.1} parent=1 // pred_check
      _
    $region31: #{tpu_custom_call.1} parent=1 // pred_check_branch
      %90 = sbr.rel (0) target = $region33
    $region32: #{tpu_custom_call.1} parent=1 // pred_region
      %92 = dma.done [#allocation10], 128
    $region33: #{tpu_custom_call.1} parent=1 // pred_fallthru
      _
    %s93 = sadd.s32 0, 0
    %p94 = scmp.lt.s32.totalorder %s93, 0
    %s95 = scalar_select %p94, %s93, 0
    %s96 = sadd.s32 0, 0
    %p97 = scmp.lt.s32.totalorder %s96, 0
    %s98 = scalar_select %p97, %s96, 0
    %s99 = sadd.s32 0, 0
    %p100 = scmp.lt.s32.totalorder %s99, 0
    %s101 = scalar_select %p100, %s99, 0
    %s102 = sadd.s32 0, 0
    %p103 = scmp.lt.s32.totalorder %s102, 0
    %s104 = scalar_select %p103, %s102, 0
    %p105 = scmp.eq.s32.totalorder 0, 0
    // Predicated region
    $region34: #{tpu_custom_call.1} parent=1 // pred_check
      %p106 = pneg %p105
    $region35: #{tpu_custom_call.1} parent=1 // pred_check_branch
      %108 = sbr.rel (%p106) target = $region37
    $region36: #{tpu_custom_call.1} parent=1 // pred_region
      %vm109 = vcmask 7168
      %110 = vst.msk [vmem:[#allocation2] sm:$0xff] %vm109, 0.0
    $region37: #{tpu_custom_call.1} parent=1 // pred_fallthru
      _
    %v111 = vld [vmem:[#allocation3] sm:$0xff]
    %v112 = vld [vmem:[#allocation6] sm:$0xff]
    %v113 = vld [vmem:[#allocation8] sm:$0xff]
    %v114 = vld [vmem:[#allocation9] sm:$0xff]
    %v115 = vlaneseq
    %v116 = vand.u32 %v115, 127
    %vm117 = vcmask 261120
    %v118 = vsel %vm117, %v111, -inf
    %119 = vmax.xlane.f32.xlu0 %v118
    %v120 = vpop.xlane.xlu0 %119
    %vm121 = vcmp.eq.f32.partialorder %v111, %v120
    %v122 = vsel %vm121, %v116, 32
    %v123 = vsel %vm117, %v122, 2147483647
    %v124 = vand.u32 %v123, 65535
    %v125 = vshra.s32 %v123, 16
    %v126 = vcvt.s32.f32 %v124
    %v127 = vcvt.s32.f32 %v125
    %128 = vmin.xlane.f32.xlu0 %v127
    %v129 = vpop.xlane.xlu0 %128
    %vm130 = vcmp.eq.f32.partialorder %v127, %v129
    %v131 = vsel %vm130, %v126, inf
    %132 = vmin.xlane.f32.xlu0 %v131
    %v133 = vpop.xlane.xlu0 %132
    %v134 = vcvt.f32.s32 %v133
    %v135 = vcvt.f32.s32 %v129
    %v136 = vshll.u32 %v135, 16
    %v137 = vadd.s32 %v136, %v134
    %v138 = vsel %vm117, %v112, -inf
    %139 = vmax.xlane.f32.xlu0 %v138
    %v140 = vpop.xlane.xlu0 %139
    %v141 = vsub.f32 %v112, %v140
    %v142 = vmul.f32 %v141, 1.442695
    %v143 = vpow.pop %v142
    %v144 = vsel %vm117, %v143, 0.0
    %145 = vadd.xlane.f32.xlu0 %v144
    %v146 = vpop.xlane.xlu0 %145
    %v147 = vlog2.pop %v146
    %v148 = vmul.f32 %v147, 0.6931472
    %v149 = vadd.f32 %v140, %v148
    %vm150 = vcmp.eq.s32.totalorder %v116, %v137
    %v151 = vsel %vm150, 1, 0
    %v152 = vcvt.s32.f32 %v151
    %v153 = vmul.f32 %v152, %v112
    %v154 = vsel %vm117, %v153, 0.0
    %155 = vadd.xlane.f32.xlu0 %v154
    %v156 = vpop.xlane.xlu0 %155
    %v157 = vsub.f32 %v149, %v156
    %v158 = vsel %vm117, %v113, -inf
    %159 = vmax.xlane.f32.xlu0 %v158
    %v160 = vpop.xlane.xlu0 %159
    %vm161 = vcmp.eq.f32.partialorder %v113, %v160
    %v162 = vsel %vm161, %v116, 32
    %v163 = vsel %vm117, %v162, 2147483647
    %v164 = vand.u32 %v163, 65535
    %v165 = vshra.s32 %v163, 16
    %v166 = vcvt.s32.f32 %v164
    %v167 = vcvt.s32.f32 %v165
    %168 = vmin.xlane.f32.xlu0 %v167
    %v169 = vpop.xlane.xlu0 %168
    %vm170 = vcmp.eq.f32.partialorder %v167, %v169
    %v171 = vsel %vm170, %v166, inf
    %172 = vmin.xlane.f32.xlu0 %v171
    %v173 = vpop.xlane.xlu0 %172
    %v174 = vcvt.f32.s32 %v173
    %v175 = vcvt.f32.s32 %v169
    %v176 = vshll.u32 %v175, 16
    %v177 = vadd.s32 %v176, %v174
    %v178 = vsel %vm117, %v114, -inf
    %179 = vmax.xlane.f32.xlu0 %v178
    %v180 = vpop.xlane.xlu0 %179
    %v181 = vsub.f32 %v114, %v180
    %v182 = vmul.f32 %v181, 1.442695
    %v183 = vpow.pop %v182
    %v184 = vsel %vm117, %v183, 0.0
    %185 = vadd.xlane.f32.xlu0 %v184
    %v186 = vpop.xlane.xlu0 %185
    %vm187 = vcmp.eq.s32.totalorder %v116, %v177
    %v188 = vsel %vm187, 1, 0
    %v189 = vcvt.s32.f32 %v188
    %v190 = vmul.f32 %v189, %v183
    %v191 = vsel %vm117, %v190, 0.0
    %192 = vadd.xlane.f32.xlu0 %v191
    %v193 = vpop.xlane.xlu0 %192
    %v194 = vrcp.pop %v186
    %v195 = vmul.f32 %v186, %v194
    %v196 = vsub.f32 1.0, %v195
    %v197 = vmul.f32 %v194, %v196
    %v198 = vadd.f32 %v194, %v197
    %vm199 = vweird.f32 %v186
    %vm200 = vweird.f32 %v194
    %vm201 = vmor %vm199, %vm200
    %v202 = vsel %vm201, %v194, %v198
    %v203 = vand.u32 2147483647, %v186
    %vm204 = vcmp.eq.f32.partialorder %v203, 8.507059e+37
    %v205 = vand.u32 %v186, 2147483648
    %v206 = vor.u32 1.1754944e-38, %v205
    %v207 = vsel %vm204, %v206, %v202
    %v208 = vmul.f32 %v193, %v207
    %v209 = vsub.f32 1.0, %v208
    %v210 = vadd.f32 %v209, 1e-06
    %v211 = vmin.f32 %v210, 1.0
    %v212 = vlog2.pop %v211
    %v213 = vmul.f32 %v212, 0.6931472
    %v214 = vmul.f32 %v157, -4.0
    %v215 = vadd.f32 %v214, %v213
    %v216 = vlaneseq
    %v217 = vshrl.u32 %v216, 7
    %s218 = sadd.s32 0, 0
    %s219 = smul.u32 %s218, 8
    %v220 = vstv %s219
    %v221 = vadd.s32 %v220, %v217
    %vm222 = vcmp.lt.s32.totalorder %v221, 8
    %v223 = vsel %vm222, %v215, 0.0
    %v224 = vld [vmem:[#allocation2] sm:$0xff]
    %v225 = vadd.f32 %v224, %v223
    %vm226 = vcmask 7168
    %227 = vst.msk [vmem:[#allocation2] sm:$0xff] %vm226, %v225
    // Predicated region
    $region38: #{tpu_custom_call.1} parent=1 // pred_check
      %p228 = pneg %p105
    $region39: #{tpu_custom_call.1} parent=1 // pred_check_branch
      %230 = sbr.rel (%p228) target = $region41
    $region40: #{tpu_custom_call.1} parent=1 // pred_region
      %v231 = vld [vmem:[#allocation2] sm:$0xff]
      %v232 = vsel %vm226, %v231, 0.0
      %233 = vadd.xlane.f32.xlu0 %v232
      %v234 = vpop.xlane.xlu0 %233
      %v235 = vrot.slane %v234, 4
      %v236 = vadd.f32 %v234, %v235
      %v237 = vrot.slane %v236, 2
      %v238 = vadd.f32 %v236, %v237
      %v239 = vrot.slane %v238, 1
      %v240 = vadd.f32 %v238, %v239
      %s241 = vtos %v240
      %v242 = vstv %s241
      %243 = vst [vmem:[#allocation11] sm:$0xff] %v242
    $region41: #{tpu_custom_call.1} parent=1 // pred_fallthru
      _
    // Predicated region
    $region42: #{tpu_custom_call.1} parent=1 // pred_check
      _
    $region43: #{tpu_custom_call.1} parent=1 // pred_check_branch
      %245 = sbr.rel (0) target = $region45
    $region44: #{tpu_custom_call.1} parent=1 // pred_region
      %247 = vsyncadd [#allocation5], 0
      %s249 = sshll.u32 [#allocation11], 4
      %s250 = int_to_ptr.vmem [resolvable:$true] %s249
      %s251 = sshll.u32 %s4, 4
      %s252 = int_to_ptr.hbm [resolvable:$true] %s251
      %254 = dma.vmem_to_hbm [thread:$0]  %s250, 128, %s252, [#allocation5]
    $region45: #{tpu_custom_call.1} parent=1 // pred_fallthru
      _
    // Predicated region
    $region46: #{tpu_custom_call.1} parent=1 // pred_check
      _
    $region47: #{tpu_custom_call.1} parent=1 // pred_check_branch
      %256 = sbr.rel (0) target = $region49
    $region48: #{tpu_custom_call.1} parent=1 // pred_region
      %258 = dma.done [#allocation5], 128
    $region49: #{tpu_custom_call.1} parent=1 // pred_fallthru
      _
    %259 = vsyncpa [#allocation4], 1
    %260 = vsyncpa [#allocation7], 1
    %261 = vsyncpa [#allocation10], 1
    %262 = vsyncpa [#allocation5], 1

</llo_original>
